<compile_context>
chip_gen: v7x
topology: tpu7x:2x2x1
jax: 0.10.0
libtpu: 0.0.40
codegen_flags: <defaults>
</compile_context>

<pallas_src>
import math
import functools

import jax
import jax.numpy as jnp
from jax.experimental import pallas as pl
from jax.experimental.pallas import tpu as pltpu

_NEG = -1.0e30  # finite "-inf" for masking ragged-tail classes / running-max init


def _loss_kernel(x2_ref, w_ref, lab_ref, wb_ref,            # inputs
                 out_ref,                                    # output (1, 2) = [loss, prec1]
                 xn_ref, m_ref, l_ref, t_ref,                # VMEM scratch
                 *, cos_m, sin_m, th, mm, scale, easy_margin,
                 num_class, n_spk, ragged):
    k = pl.program_id(0)
    kc = pl.num_programs(0)
    B = x2_ref.shape[0]            # 2 * n_spk
    TC = w_ref.shape[0]            # class tile size

    # -------- one-time init: normalize embeddings once (f32 math, bf16 store) --------
    @pl.when(k == 0)
    def _init():
        x = x2_ref[...]
        ss = jnp.sum(x * x, axis=-1, keepdims=True)
        # F.normalize(x, dim=1, eps=1e-12)  ==  x * rsqrt(max(ss, eps^2))
        xn_ref[...] = (x * jax.lax.rsqrt(jnp.maximum(ss, 1e-24))).astype(xn_ref.dtype)
        m_ref[...] = jnp.full_like(m_ref, _NEG)
        l_ref[...] = jnp.zeros_like(l_ref)
        t_ref[...] = jnp.zeros_like(t_ref)

    # -------- AAMSoftmax branch: one class tile, online softmax update --------
    # weight tile streamed in its stored dtype (f32 or bf16); row-normalize in f32.
    w_t = w_ref[...].astype(jnp.float32)
    wss = jnp.sum(w_t * w_t, axis=-1, keepdims=True)
    wn = (w_t * jax.lax.rsqrt(jnp.maximum(wss, 1e-24))).astype(jnp.bfloat16)

    # cosine tile = xn @ wn_tile.T   (bf16 MXU operands, f32 accumulation)
    cos = jax.lax.dot_general(xn_ref[...], wn, (((1,), (1,)), ((), ())),
                              preferred_element_type=jnp.float32)       # (B, TC)

    lab = lab_ref[...]                                                   # (B, 1) int32
    local_idx = jax.lax.broadcasted_iota(jnp.int32, (B, TC), 1)
    cls = local_idx + k * TC                                             # global class id
    one_hot = cls == lab

    # margin math only on the (B,1) target-cosine column (0 if target not in tile)
    t_cos = jnp.sum(jnp.where(one_hot, cos, 0.0), axis=-1, keepdims=True)
    sine = jnp.sqrt(jnp.clip(1.0 - t_cos * t_cos, 0.0, 1.0))
    phi = t_cos * cos_m - sine * sin_m
    if easy_margin:
        phi = jnp.where(t_cos > 0.0, phi, t_cos)
    else:
        phi = jnp.where(t_cos - th > 0.0, phi, t_cos - mm)

    adj = jnp.where(one_hot, phi, cos) * scale
    if ragged:
        # Select-based masking of ragged-tail garbage (NaN/Inf safe).  Statically
        # skipped when C is a multiple of the class tile.
        adj = jnp.where(cls < num_class, adj, _NEG)

    # online softmax accumulators
    m_prev = m_ref[...]
    tile_max = jnp.max(adj, axis=-1, keepdims=True)
    m_new = jnp.maximum(m_prev, tile_max)
    l_ref[...] = (l_ref[...] * jnp.exp(m_prev - m_new)
                  + jnp.sum(jnp.exp(adj - m_new), axis=-1, keepdims=True))
    # target logit accumulated as a (B,1) expression (phi*scale is exactly the
    # target column of adj), no extra (B,TC) select / row reduction.
    in_tile = (lab >= k * TC) & (lab < (k + 1) * TC)
    t_ref[...] = t_ref[...] + jnp.where(in_tile, phi * scale, 0.0)
    m_ref[...] = m_new

    # -------- finalize on last tile: CE mean + top-1 + AngleProto branch --------
    @pl.when(k == kc - 1)
    def _final():
        lse = m_ref[...] + jnp.log(l_ref[...])
        nlossS = jnp.sum(lse - t_ref[...], axis=0, keepdims=True) / B          # (1,1)
        # target is top-1 iff its logit equals the running max (exact-tie
        # behavior differs from torch.argmax's first-max; prec1 is a metric).
        correct = (t_ref[...] >= m_ref[...]).astype(jnp.float32)
        prec1 = jnp.sum(correct, axis=0, keepdims=True) * (100.0 / B)          # (1,1)

        # AngleProto: positives are rows [0, n_spk), anchors rows [n_spk, 2*n_spk)
        # (n_spk multiple of 8 keeps the anchor slice sublane-aligned / copy-free)
        xp = xn_ref[pl.ds(0, n_spk), :]
        xa = xn_ref[pl.ds(n_spk, n_spk), :]
        cs = jax.lax.dot_general(xp, xa, (((1,), (1,)), ((), ())),
                                 preferred_element_type=jnp.float32)           # (N, N)
        # torch.clamp(self.w, 1e-6) is a no-op in the original (not assigned)
        logits_ap = cs * wb_ref[0] + wb_ref[1]
        rm = jnp.max(logits_ap, axis=-1, keepdims=True)
        lse_ap = rm + jnp.log(jnp.sum(jnp.exp(logits_ap - rm),
                                      axis=-1, keepdims=True))
        eye = (jax.lax.broadcasted_iota(jnp.int32, (n_spk, n_spk), 0) ==
               jax.lax.broadcasted_iota(jnp.int32, (n_spk, n_spk), 1))
        tgt_ap = jnp.sum(jnp.where(eye, logits_ap, 0.0), axis=-1, keepdims=True)
        nlossM = jnp.sum(lse_ap - tgt_ap, axis=0, keepdims=True) / n_spk       # (1,1)

        col = jax.lax.broadcasted_iota(jnp.int32, (1, 2), 1)
        out_ref[...] = jnp.where(col == 0, nlossS + nlossM, prec1).astype(jnp.float32)


def aamsoftmax_proto_loss(x, label, weight, w_ap, b_ap,
                          margin=0.3, scale=15.0, easy_margin=False, tile_c=1024):
    """x: (N, 2, D), label: (N,) int32, weight: (C, D) f32 OR bf16, w_ap/b_ap scalars."""
    N, two, D = x.shape
    assert two == 2
    C = weight.shape[0]
    B = 2 * N

    # class tiling over the UNPADDED weight (no HBM copy of the classifier).
    if C <= tile_c:
        TC, KC = C, 1                      # single full-extent block (any C legal)
    else:
        TC = max(128, (int(tile_c) // 128) * 128)
        KC = -(-C // TC)                   # cdiv; ragged last tile handled in-kernel
    ragged = (KC * TC) != C

    # glue (reorder / small concats / parameter packing) stays in plain JAX
    x_pos = x[:, 0, :].astype(jnp.float32)
    x_anc = jnp.mean(x[:, 1:, :], axis=1).astype(jnp.float32)   # == x[:,1,:] for 2 utts
    x2 = jnp.concatenate([x_pos, x_anc], axis=0)                # (B, D), [pos; anc]
    lab2 = jnp.concatenate([label, label]).astype(jnp.int32).reshape(B, 1)
    wb = jnp.stack([jnp.float32(w_ap), jnp.float32(b_ap)])      # (2,) scalars -> SMEM

    kernel = functools.partial(
        _loss_kernel,
        cos_m=math.cos(margin), sin_m=math.sin(margin),
        th=math.cos(math.pi - margin), mm=math.sin(math.pi - margin) * margin,
        scale=float(scale), easy_margin=bool(easy_margin),
        num_class=C, n_spk=N, ragged=ragged)

    grid_spec = pltpu.PrefetchScalarGridSpec(
        num_scalar_prefetch=0,
        grid=(KC,),
        in_specs=[
            pl.BlockSpec((B, D), lambda k: (0, 0)),              # x2 (resident)
            pl.BlockSpec((TC, D), lambda k: (k, 0)),             # weight class tile (stored dtype)
            pl.BlockSpec((B, 1), lambda k: (0, 0)),              # labels (resident)
            pl.BlockSpec(memory_space=pltpu.MemorySpace.SMEM),   # (w_ap, b_ap)
        ],
        out_specs=pl.BlockSpec((1, 2), lambda k: (0, 0)),
        scratch_shapes=[
            pltpu.VMEM((B, D), jnp.bfloat16),                    # normalized x (bf16, written once)
            pltpu.VMEM((B, 1), jnp.float32),                     # running max
            pltpu.VMEM((B, 1), jnp.float32),                     # running sum-exp
            pltpu.VMEM((B, 1), jnp.float32),                     # target logit
        ])

    # VMEM budget derived from actual buffer sizes, capped at 64 MiB (v7x-safe).
    lane = lambda n: ((n + 127) // 128) * 128
    w_item = jnp.dtype(weight.dtype).itemsize
    est = (2 * TC * lane(D) * w_item          # double-buffered weight tile
           + 2 * B * lane(D) * 4              # resident x2 (conservative 2x)
           + B * lane(D) * 2                  # bf16 xn scratch
           + 8 * B * lane(TC) * 4             # (B, TC) temporaries headroom
           + (1 << 20))
    vmem_limit = int(min(64 * 1024 * 1024, max(32 * 1024 * 1024, 2 * est)))

    out = pl.pallas_call(
        kernel,
        out_shape=jax.ShapeDtypeStruct((1, 2), jnp.float32),
        grid_spec=grid_spec,
        compiler_params=pltpu.CompilerParams(
            dimension_semantics=("arbitrary",),        # class axis is a reduction
            vmem_limit_bytes=vmem_limit),
    )(x2, weight, lab2, wb)
    return out[0, 0], out[0, 1]


def _reference(x, label, weight, w_ap, b_ap, margin=0.3, scale=15.0, easy_margin=False):
    """Pure-JAX reference mirroring the kernel's numerics (bf16 MXU operands)."""
    N, _, D = x.shape
    C = weight.shape[0]
    xf = x.reshape(-1, D).astype(jnp.float32)
    lab2 = jnp.repeat(label, 2)
    xn = xf * jax.lax.rsqrt(jnp.maximum(jnp.sum(xf * xf, -1, keepdims=True), 1e-24))
    wf = weight.astype(jnp.float32)
    wn = wf * jax.lax.rsqrt(jnp.maximum(jnp.sum(wf * wf, -1, keepdims=True), 1e-24))
    cosine = jnp.dot(xn.astype(jnp.bfloat16), wn.astype(jnp.bfloat16).T,
                     preferred_element_type=jnp.float32)
    sine = jnp.sqrt(jnp.clip(1.0 - cosine ** 2, 0.0, 1.0))
    cm, sm = math.cos(margin), math.sin(margin)
    th = math.cos(math.pi - margin)
    mm = math.sin(math.pi - margin) * margin
    phi = cosine * cm - sine * sm
    phi = (jnp.where(cosine > 0, phi, cosine) if easy_margin
           else jnp.where(cosine - th > 0, phi, cosine - mm))
    one_hot = jax.nn.one_hot(lab2, C)
    logits = (one_hot * phi + (1.0 - one_hot) * cosine) * scale
    logp = jax.nn.log_softmax(logits, axis=-1)
    nlossS = -jnp.mean(jnp.take_along_axis(logp, lab2[:, None], axis=-1))
    prec1 = jnp.mean((jnp.argmax(logits, -1) == lab2).astype(jnp.float32)) * 100.0

    pos = x[:, 0, :].astype(jnp.float32)
    anc = jnp.mean(x[:, 1:, :], axis=1).astype(jnp.float32)
    posn = pos * jax.lax.rsqrt(jnp.maximum(jnp.sum(pos * pos, -1, keepdims=True), 1e-24))
    ancn = anc * jax.lax.rsqrt(jnp.maximum(jnp.sum(anc * anc, -1, keepdims=True), 1e-24))
    cs = jnp.dot(posn.astype(jnp.bfloat16), ancn.astype(jnp.bfloat16).T,
                 preferred_element_type=jnp.float32) * w_ap + b_ap
    logp2 = jax.nn.log_softmax(cs, axis=-1)
    nlossM = -jnp.mean(jnp.diag(logp2))
    return nlossS + nlossM, prec1


if __name__ == "__main__":
    key = jax.random.PRNGKey(0)
    w_ap = jnp.float32(10.0)   # AngleProto init_w
    b_ap = jnp.float32(-5.0)   # AngleProto init_b

    # ---- case 1: toy shapes, single full-extent class tile (f32 weight) ----
    N, D, C = 8, 32, 16
    kx, kw, kl, key = jax.random.split(key, 4)
    x = jax.random.normal(kx, (N, 2, D), dtype=jnp.float32)
    label = jax.random.randint(kl, (N,), 0, C, dtype=jnp.int32)
    std = math.sqrt(2.0 / (C + D))                       # xavier_normal_ on (C, D)
    weight = jax.random.normal(kw, (C, D), dtype=jnp.float32) * std

    loss, prec1 = aamsoftmax_proto_loss(x, label, weight, w_ap, b_ap)
    jax.block_until_ready((loss, prec1))
    ref_loss, ref_prec = _reference(x, label, weight, w_ap, b_ap)
    assert jnp.allclose(loss, ref_loss, rtol=5e-3, atol=5e-3), (loss, ref_loss)
    assert jnp.allclose(prec1, ref_prec, rtol=1e-3, atol=1e-3), (prec1, ref_prec)

    # ---- case 2: multi-tile class axis with a ragged last tile (no padding) ----
    N2, D2, C2 = 8, 32, 300
    kx2, kw2, kl2, key = jax.random.split(key, 4)
    x2 = jax.random.normal(kx2, (N2, 2, D2), dtype=jnp.float32)
    label2 = jax.random.randint(kl2, (N2,), 0, C2, dtype=jnp.int32)
    std2 = math.sqrt(2.0 / (C2 + D2))
    weight2 = jax.random.normal(kw2, (C2, D2), dtype=jnp.float32) * std2

    loss2, prec2 = aamsoftmax_proto_loss(x2, label2, weight2, w_ap, b_ap, tile_c=128)
    jax.block_until_ready((loss2, prec2))
    ref_loss2, ref_prec2 = _reference(x2, label2, weight2, w_ap, b_ap)
    assert jnp.allclose(loss2, ref_loss2, rtol=5e-3, atol=5e-3), (loss2, ref_loss2)
    assert jnp.allclose(prec2, ref_prec2, rtol=1e-3, atol=1e-3), (prec2, ref_prec2)

    # ---- case 3: bf16 classifier weight streamed directly (half HBM traffic) ----
    weight3 = weight2.astype(jnp.bfloat16)
    loss3, prec3 = aamsoftmax_proto_loss(x2, label2, weight3, w_ap, b_ap, tile_c=128)
    jax.block_until_ready((loss3, prec3))
    ref_loss3, ref_prec3 = _reference(x2, label2, weight3, w_ap, b_ap)
    assert jnp.allclose(loss3, ref_loss3, rtol=5e-3, atol=5e-3), (loss3, ref_loss3)
    assert jnp.allclose(prec3, ref_prec3, rtol=1e-3, atol=1e-3), (prec3, ref_prec3)

    print("KERNEL_OK")
</pallas_src>

<mosaic_0001>
module attributes {stable_mosaic.version = 11 : i64} {
  func.func @_loss_kernel(%arg0: i32, %arg1: memref<16x32xf32, #tpu.memory_space<vmem>>, %arg2: memref<16x32xf32, #tpu.memory_space<vmem>>, %arg3: memref<16x1xi32, #tpu.memory_space<vmem>>, %arg4: memref<2xf32, #tpu.memory_space<smem>>, %arg5: memref<1x2xf32, #tpu.memory_space<vmem>>, %arg6: memref<16x32xbf16, #tpu.memory_space<vmem>>, %arg7: memref<16x1xf32, #tpu.memory_space<vmem>>, %arg8: memref<16x1xf32, #tpu.memory_space<vmem>>, %arg9: memref<16x1xf32, #tpu.memory_space<vmem>>) attributes {dimension_semantics = [#tpu.dimension_semantics<arbitrary>], iteration_bounds = array<i64: 1>, scalar_prefetch = 0 : i64, scratch_operands = 4 : i64, tpu.core_type = #tpu.core_type<tc>, window_params = [{pipeline_mode = #tpu.pipeline_mode<synchronous>, transform_indices = @transform_0, window_bounds = array<i64: 16, 32>}, {transform_indices = @transform_1, window_bounds = array<i64: 16, 32>}, {pipeline_mode = #tpu.pipeline_mode<synchronous>, transform_indices = @transform_2, window_bounds = array<i64: 16, 1>}, {transform_indices = @transform_3, window_bounds = array<i64: 2>}, {pipeline_mode = #tpu.pipeline_mode<synchronous>, transform_indices = @transform_4, window_bounds = array<i64: 1, 2>}]} {
    %c0_i32 = arith.constant 0 : i32
    %0 = arith.cmpi eq, %arg0, %c0_i32 : i32
    %1 = arith.extui %0 : i1 to i32
    %c0_i32_0 = arith.constant 0 : i32
    %2 = arith.cmpi ne, %1, %c0_i32_0 : i32
    scf.if %2 {
      %c0_39 = arith.constant 0 : index
      %c0_40 = arith.constant 0 : index
      %85 = vector.load %arg1[%c0_39, %c0_40] : memref<16x32xf32, #tpu.memory_space<vmem>>, vector<16x32xf32>
      %86 = arith.mulf %85, %85 : vector<16x32xf32>
      %cst_41 = arith.constant dense<0.000000e+00> : vector<16xf32>
      %87 = vector.multi_reduction <add>, %86, %cst_41 [1] : vector<16x32xf32> to vector<16xf32>
      %88 = vector.shape_cast %87 : vector<16xf32> to vector<16x1xf32>
      %cst_42 = arith.constant 1.000000e-24 : f32
      %89 = vector.broadcast %cst_42 : f32 to vector<16x1xf32>
      %90 = arith.maximumf %88, %89 : vector<16x1xf32>
      %91 = math.rsqrt %90 : vector<16x1xf32>
      %92 = vector.broadcast %91 : vector<16x1xf32> to vector<16x32xf32>
      %93 = arith.mulf %85, %92 : vector<16x32xf32>
      %94 = arith.truncf %93 : vector<16x32xf32> to vector<16x32xbf16>
      %c0_43 = arith.constant 0 : index
      %c0_44 = arith.constant 0 : index
      %95 = vector.load %arg6[%c0_43, %c0_44] : memref<16x32xbf16, #tpu.memory_space<vmem>>, vector<16x32xbf16>
      tpu.vector_store %arg6[%c0_43, %c0_44], %94 {strides = array<i32>} : memref<16x32xbf16, #tpu.memory_space<vmem>>, vector<16x32xbf16>,
      %cst_45 = arith.constant -1.000000e+30 : f32
      %96 = vector.broadcast %cst_45 : f32 to vector<16x1xf32>
      %c0_46 = arith.constant 0 : index
      %c0_47 = arith.constant 0 : index
      %97 = vector.load %arg7[%c0_46, %c0_47] : memref<16x1xf32, #tpu.memory_space<vmem>>, vector<16x1xf32>
      tpu.vector_store %arg7[%c0_46, %c0_47], %96 {strides = array<i32>} : memref<16x1xf32, #tpu.memory_space<vmem>>, vector<16x1xf32>,
      %cst_48 = arith.constant 0.000000e+00 : f32
      %98 = vector.broadcast %cst_48 : f32 to vector<16x1xf32>
      %c0_49 = arith.constant 0 : index
      %c0_50 = arith.constant 0 : index
      %99 = vector.load %arg8[%c0_49, %c0_50] : memref<16x1xf32, #tpu.memory_space<vmem>>, vector<16x1xf32>
      tpu.vector_store %arg8[%c0_49, %c0_50], %98 {strides = array<i32>} : memref<16x1xf32, #tpu.memory_space<vmem>>, vector<16x1xf32>,
      %cst_51 = arith.constant 0.000000e+00 : f32
      %100 = vector.broadcast %cst_51 : f32 to vector<16x1xf32>
      %c0_52 = arith.constant 0 : index
      %c0_53 = arith.constant 0 : index
      %101 = vector.load %arg9[%c0_52, %c0_53] : memref<16x1xf32, #tpu.memory_space<vmem>>, vector<16x1xf32>
      tpu.vector_store %arg9[%c0_52, %c0_53], %100 {strides = array<i32>} : memref<16x1xf32, #tpu.memory_space<vmem>>, vector<16x1xf32>,
    } else {
    }
    %c0 = arith.constant 0 : index
    %c0_1 = arith.constant 0 : index
    %3 = vector.load %arg2[%c0, %c0_1] : memref<16x32xf32, #tpu.memory_space<vmem>>, vector<16x32xf32>
    %4 = arith.mulf %3, %3 : vector<16x32xf32>
    %cst = arith.constant dense<0.000000e+00> : vector<16xf32>
    %5 = vector.multi_reduction <add>, %4, %cst [1] : vector<16x32xf32> to vector<16xf32>
    %6 = vector.shape_cast %5 : vector<16xf32> to vector<16x1xf32>
    %cst_2 = arith.constant 1.000000e-24 : f32
    %7 = vector.broadcast %cst_2 : f32 to vector<16x1xf32>
    %8 = arith.maximumf %6, %7 : vector<16x1xf32>
    %9 = math.rsqrt %8 : vector<16x1xf32>
    %10 = vector.broadcast %9 : vector<16x1xf32> to vector<16x32xf32>
    %11 = arith.mulf %3, %10 : vector<16x32xf32>
    %12 = arith.truncf %11 : vector<16x32xf32> to vector<16x32xbf16>
    %c0_3 = arith.constant 0 : index
    %c0_4 = arith.constant 0 : index
    %13 = vector.load %arg6[%c0_3, %c0_4] : memref<16x32xbf16, #tpu.memory_space<vmem>>, vector<16x32xbf16>
    %cst_5 = arith.constant dense<0.000000e+00> : vector<16x16xf32>
    %14 = tpu.matmul %13, %12, %cst_5 {dimension_numbers = #tpu.dot_dimension_numbers<[1], [1], [0], [0], [0, 0, 1, 0], [], []>} : vector<16x32xbf16>, vector<16x32xbf16>, vector<16x16xf32> -> vector<16x16xf32>
    %c0_6 = arith.constant 0 : index
    %c0_7 = arith.constant 0 : index
    %15 = vector.load %arg3[%c0_6, %c0_7] : memref<16x1xi32, #tpu.memory_space<vmem>>, vector<16x1xi32>
    %16 = tpu.iota {dimensions = array<i32: 1>} : vector<16x16xi32>
    %c16_i32 = arith.constant 16 : i32
    %17 = arith.muli %arg0, %c16_i32 : i32
    %18 = vector.broadcast %17 : i32 to vector<16x16xi32>
    %19 = arith.addi %16, %18 : vector<16x16xi32>
    %20 = vector.broadcast %15 : vector<16x1xi32> to vector<16x16xi32>
    %21 = arith.cmpi eq, %19, %20 : vector<16x16xi32>
    %cst_8 = arith.constant 0.000000e+00 : f32
    %22 = vector.broadcast %cst_8 : f32 to vector<16x16xf32>
    %23 = arith.select %21, %14, %22 : vector<16x16xi1>, vector<16x16xf32>
    %cst_9 = arith.constant dense<0.000000e+00> : vector<16xf32>
    %24 = vector.multi_reduction <add>, %23, %cst_9 [1] : vector<16x16xf32> to vector<16xf32>
    %25 = vector.shape_cast %24 : vector<16xf32> to vector<16x1xf32>
    %26 = arith.mulf %25, %25 : vector<16x1xf32>
    %cst_10 = arith.constant 1.000000e+00 : f32
    %27 = vector.broadcast %cst_10 : f32 to vector<16x1xf32>
    %28 = arith.subf %27, %26 : vector<16x1xf32>
    %cst_11 = arith.constant 0.000000e+00 : f32
    %cst_12 = arith.constant 1.000000e+00 : f32
    %29 = vector.broadcast %cst_11 : f32 to vector<16x1xf32>
    %30 = arith.maximumf %29, %28 : vector<16x1xf32>
    %31 = vector.broadcast %cst_12 : f32 to vector<16x1xf32>
    %32 = arith.minimumf %31, %30 : vector<16x1xf32>
    %33 = math.sqrt %32 : vector<16x1xf32>
    %cst_13 = arith.constant 0.955336511 : f32
    %34 = vector.broadcast %cst_13 : f32 to vector<16x1xf32>
    %35 = arith.mulf %25, %34 : vector<16x1xf32>
    %cst_14 = arith.constant 0.295520216 : f32
    %36 = vector.broadcast %cst_14 : f32 to vector<16x1xf32>
    %37 = arith.mulf %33, %36 : vector<16x1xf32>
    %38 = arith.subf %35, %37 : vector<16x1xf32>
    %cst_15 = arith.constant -0.955336511 : f32
    %39 = vector.broadcast %cst_15 : f32 to vector<16x1xf32>
    %40 = arith.subf %25, %39 : vector<16x1xf32>
    %cst_16 = arith.constant 0.000000e+00 : f32
    %41 = vector.broadcast %cst_16 : f32 to vector<16x1xf32>
    %42 = arith.cmpf ogt, %40, %41 : vector<16x1xf32>
    %cst_17 = arith.constant 0.0886560603 : f32
    %43 = vector.broadcast %cst_17 : f32 to vector<16x1xf32>
    %44 = arith.subf %25, %43 : vector<16x1xf32>
    %45 = arith.select %42, %38, %44 : vector<16x1xi1>, vector<16x1xf32>
    %46 = vector.shape_cast %45 : vector<16x1xf32> to vector<16x1xf32>
    %47 = vector.broadcast %46 : vector<16x1xf32> to vector<16x16xf32>
    %48 = arith.select %21, %47, %14 : vector<16x16xi1>, vector<16x16xf32>
    %cst_18 = arith.constant 1.500000e+01 : f32
    %49 = vector.broadcast %cst_18 : f32 to vector<16x16xf32>
    %50 = arith.mulf %48, %49 : vector<16x16xf32>
    %c0_19 = arith.constant 0 : index
    %c0_20 = arith.constant 0 : index
    %51 = vector.load %arg7[%c0_19, %c0_20] : memref<16x1xf32, #tpu.memory_space<vmem>>, vector<16x1xf32>
    %cst_21 = arith.constant dense<0xFF800000> : vector<16xf32>
    %52 = vector.multi_reduction <maximumf>, %50, %cst_21 [1] : vector<16x16xf32> to vector<16xf32>
    %53 = vector.shape_cast %52 : vector<16xf32> to vector<16x1xf32>
    %54 = arith.maximumf %51, %53 : vector<16x1xf32>
    %c0_22 = arith.constant 0 : index
    %c0_23 = arith.constant 0 : index
    %55 = vector.load %arg8[%c0_22, %c0_23] : memref<16x1xf32, #tpu.memory_space<vmem>>, vector<16x1xf32>
    %56 = arith.subf %51, %54 : vector<16x1xf32>
    %57 = math.exp %56 : vector<16x1xf32>
    %58 = arith.mulf %55, %57 : vector<16x1xf32>
    %59 = vector.broadcast %54 : vector<16x1xf32> to vector<16x16xf32>
    %60 = arith.subf %50, %59 : vector<16x16xf32>
    %61 = math.exp %60 : vector<16x16xf32>
    %cst_24 = arith.constant dense<0.000000e+00> : vector<16xf32>
    %62 = vector.multi_reduction <add>, %61, %cst_24 [1] : vector<16x16xf32> to vector<16xf32>
    %63 = vector.shape_cast %62 : vector<16xf32> to vector<16x1xf32>
    %64 = arith.addf %58, %63 : vector<16x1xf32>
    %c0_25 = arith.constant 0 : index
    %c0_26 = arith.constant 0 : index
    %65 = vector.load %arg8[%c0_25, %c0_26] : memref<16x1xf32, #tpu.memory_space<vmem>>, vector<16x1xf32>
    tpu.vector_store %arg8[%c0_25, %c0_26], %64 {strides = array<i32>} : memref<16x1xf32, #tpu.memory_space<vmem>>, vector<16x1xf32>,
    %c16_i32_27 = arith.constant 16 : i32
    %66 = arith.muli %arg0, %c16_i32_27 : i32
    %67 = vector.broadcast %66 : i32 to vector<16x1xi32>
    %68 = arith.cmpi sge, %15, %67 : vector<16x1xi32>
    %c1_i32 = arith.constant 1 : i32
    %69 = arith.addi %arg0, %c1_i32 : i32
    %c16_i32_28 = arith.constant 16 : i32
    %70 = arith.muli %69, %c16_i32_28 : i32
    %71 = vector.broadcast %70 : i32 to vector<16x1xi32>
    %72 = arith.cmpi slt, %15, %71 : vector<16x1xi32>
    %73 = arith.andi %68, %72 : vector<16x1xi1>
    %c0_29 = arith.constant 0 : index
    %c0_30 = arith.constant 0 : index
    %74 = vector.load %arg9[%c0_29, %c0_30] : memref<16x1xf32, #tpu.memory_space<vmem>>, vector<16x1xf32>
    %cst_31 = arith.constant 1.500000e+01 : f32
    %75 = vector.broadcast %cst_31 : f32 to vector<16x1xf32>
    %76 = arith.mulf %45, %75 : vector<16x1xf32>
    %cst_32 = arith.constant 0.000000e+00 : f32
    %77 = vector.broadcast %cst_32 : f32 to vector<16x1xf32>
    %78 = arith.select %73, %76, %77 : vector<16x1xi1>, vector<16x1xf32>
    %79 = arith.addf %74, %78 : vector<16x1xf32>
    %c0_33 = arith.constant 0 : index
    %c0_34 = arith.constant 0 : index
    %80 = vector.load %arg9[%c0_33, %c0_34] : memref<16x1xf32, #tpu.memory_space<vmem>>, vector<16x1xf32>
    tpu.vector_store %arg9[%c0_33, %c0_34], %79 {strides = array<i32>} : memref<16x1xf32, #tpu.memory_space<vmem>>, vector<16x1xf32>,
    %c0_35 = arith.constant 0 : index
    %c0_36 = arith.constant 0 : index
    %81 = vector.load %arg7[%c0_35, %c0_36] : memref<16x1xf32, #tpu.memory_space<vmem>>, vector<16x1xf32>
    tpu.vector_store %arg7[%c0_35, %c0_36], %54 {strides = array<i32>} : memref<16x1xf32, #tpu.memory_space<vmem>>, vector<16x1xf32>,
    %c0_i32_37 = arith.constant 0 : i32
    %82 = arith.cmpi eq, %arg0, %c0_i32_37 : i32
    %83 = arith.extui %82 : i1 to i32
    %c0_i32_38 = arith.constant 0 : i32
    %84 = arith.cmpi ne, %83, %c0_i32_38 : i32
    scf.if %84 {
      %c0_39 = arith.constant 0 : index
      %c0_40 = arith.constant 0 : index
      %85 = vector.load %arg7[%c0_39, %c0_40] : memref<16x1xf32, #tpu.memory_space<vmem>>, vector<16x1xf32>
      %c0_41 = arith.constant 0 : index
      %c0_42 = arith.constant 0 : index
      %86 = vector.load %arg8[%c0_41, %c0_42] : memref<16x1xf32, #tpu.memory_space<vmem>>, vector<16x1xf32>
      %87 = math.log %86 : vector<16x1xf32>
      %88 = arith.addf %85, %87 : vector<16x1xf32>
      %c0_43 = arith.constant 0 : index
      %c0_44 = arith.constant 0 : index
      %89 = vector.load %arg9[%c0_43, %c0_44] : memref<16x1xf32, #tpu.memory_space<vmem>>, vector<16x1xf32>
      %90 = arith.subf %88, %89 : vector<16x1xf32>
      %cst_45 = arith.constant dense<0.000000e+00> : vector<1xf32>
      %91 = vector.multi_reduction <add>, %90, %cst_45 [0] : vector<16x1xf32> to vector<1xf32>
      %92 = vector.shape_cast %91 : vector<1xf32> to vector<1x1xf32>
      %cst_46 = arith.constant 1.600000e+01 : f32
      %93 = vector.broadcast %cst_46 : f32 to vector<1x1xf32>
      %94 = arith.divf %92, %93 : vector<1x1xf32>
      %c0_47 = arith.constant 0 : index
      %c0_48 = arith.constant 0 : index
      %95 = vector.load %arg9[%c0_47, %c0_48] : memref<16x1xf32, #tpu.memory_space<vmem>>, vector<16x1xf32>
      %c0_49 = arith.constant 0 : index
      %c0_50 = arith.constant 0 : index
      %96 = vector.load %arg7[%c0_49, %c0_50] : memref<16x1xf32, #tpu.memory_space<vmem>>, vector<16x1xf32>
      %97 = arith.cmpf oge, %95, %96 : vector<16x1xf32>
      %98 = arith.extui %97 : vector<16x1xi1> to vector<16x1xi32>
      %99 = arith.sitofp %98 : vector<16x1xi32> to vector<16x1xf32>
      %cst_51 = arith.constant dense<0.000000e+00> : vector<1xf32>
      %100 = vector.multi_reduction <add>, %99, %cst_51 [0] : vector<16x1xf32> to vector<1xf32>
      %101 = vector.shape_cast %100 : vector<1xf32> to vector<1x1xf32>
      %cst_52 = arith.constant 6.250000e+00 : f32
      %102 = vector.broadcast %cst_52 : f32 to vector<1x1xf32>
      %103 = arith.mulf %101, %102 : vector<1x1xf32>
      %c0_53 = arith.constant 0 : index
      %c0_54 = arith.constant 0 : index
      %104 = vector.load %arg6[%c0_53, %c0_54] : memref<16x32xbf16, #tpu.memory_space<vmem>>, vector<8x32xbf16>
      %c8 = arith.constant 8 : index
      %c0_55 = arith.constant 0 : index
      %105 = vector.load %arg6[%c8, %c0_55] : memref<16x32xbf16, #tpu.memory_space<vmem>>, vector<8x32xbf16>
      %cst_56 = arith.constant dense<0.000000e+00> : vector<8x8xf32>
      %106 = tpu.matmul %104, %105, %cst_56 {dimension_numbers = #tpu.dot_dimension_numbers<[1], [1], [0], [0], [0, 0, 1, 0], [], []>} : vector<8x32xbf16>, vector<8x32xbf16>, vector<8x8xf32> -> vector<8x8xf32>
      %c0_57 = arith.constant 0 : index
      %107 = memref.load %arg4[%c0_57] : memref<2xf32, #tpu.memory_space<smem>>
      %108 = vector.broadcast %107 : f32 to vector<8x8xf32>
      %109 = arith.mulf %106, %108 : vector<8x8xf32>
      %c1 = arith.constant 1 : index
      %110 = memref.load %arg4[%c1] : memref<2xf32, #tpu.memory_space<smem>>
      %111 = vector.broadcast %110 : f32 to vector<8x8xf32>
      %112 = arith.addf %109, %111 : vector<8x8xf32>
      %cst_58 = arith.constant dense<0xFF800000> : vector<8xf32>
      %113 = vector.multi_reduction <maximumf>, %112, %cst_58 [1] : vector<8x8xf32> to vector<8xf32>
      %114 = vector.shape_cast %113 : vector<8xf32> to vector<8x1xf32>
      %115 = vector.broadcast %114 : vector<8x1xf32> to vector<8x8xf32>
      %116 = arith.subf %112, %115 : vector<8x8xf32>
      %117 = math.exp %116 : vector<8x8xf32>
      %cst_59 = arith.constant dense<0.000000e+00> : vector<8xf32>
      %118 = vector.multi_reduction <add>, %117, %cst_59 [1] : vector<8x8xf32> to vector<8xf32>
      %119 = vector.shape_cast %118 : vector<8xf32> to vector<8x1xf32>
      %120 = math.log %119 : vector<8x1xf32>
      %121 = arith.addf %114, %120 : vector<8x1xf32>
      %122 = tpu.iota {dimensions = array<i32: 0>} : vector<8x8xi32>
      %123 = tpu.iota {dimensions = array<i32: 1>} : vector<8x8xi32>
      %124 = arith.cmpi eq, %122, %123 : vector<8x8xi32>
      %cst_60 = arith.constant 0.000000e+00 : f32
      %125 = vector.broadcast %cst_60 : f32 to vector<8x8xf32>
      %126 = arith.select %124, %112, %125 : vector<8x8xi1>, vector<8x8xf32>
      %cst_61 = arith.constant dense<0.000000e+00> : vector<8xf32>
      %127 = vector.multi_reduction <add>, %126, %cst_61 [1] : vector<8x8xf32> to vector<8xf32>
      %128 = vector.shape_cast %127 : vector<8xf32> to vector<8x1xf32>
      %129 = arith.subf %121, %128 : vector<8x1xf32>
      %cst_62 = arith.constant dense<0.000000e+00> : vector<1xf32>
      %130 = vector.multi_reduction <add>, %129, %cst_62 [0] : vector<8x1xf32> to vector<1xf32>
      %131 = vector.shape_cast %130 : vector<1xf32> to vector<1x1xf32>
      %cst_63 = arith.constant 8.000000e+00 : f32
      %132 = vector.broadcast %cst_63 : f32 to vector<1x1xf32>
      %133 = arith.divf %131, %132 : vector<1x1xf32>
      %134 = tpu.iota {dimensions = array<i32: 1>} : vector<1x2xi32>
      %c0_i32_64 = arith.constant 0 : i32
      %135 = vector.broadcast %c0_i32_64 : i32 to vector<1x2xi32>
      %136 = arith.cmpi eq, %134, %135 : vector<1x2xi32>
      %137 = arith.addf %94, %133 : vector<1x1xf32>
      %138 = vector.shape_cast %137 : vector<1x1xf32> to vector<1x1xf32>
      %139 = vector.broadcast %138 : vector<1x1xf32> to vector<1x2xf32>
      %140 = vector.shape_cast %103 : vector<1x1xf32> to vector<1x1xf32>
      %141 = vector.broadcast %140 : vector<1x1xf32> to vector<1x2xf32>
      %142 = arith.select %136, %139, %141 : vector<1x2xi1>, vector<1x2xf32>
      %c0_65 = arith.constant 0 : index
      %c0_66 = arith.constant 0 : index
      %143 = vector.load %arg5[%c0_65, %c0_66] : memref<1x2xf32, #tpu.memory_space<vmem>>, vector<1x2xf32>
      tpu.vector_store %arg5[%c0_65, %c0_66], %142 {strides = array<i32>} : memref<1x2xf32, #tpu.memory_space<vmem>>, vector<1x2xf32>,
    } else {
    }
    return
  }
  func.func @transform_0(%arg0: i32) -> (i32, i32) {
    %c0_i32 = arith.constant 0 : i32
    %c0_i32_0 = arith.constant 0 : i32
    %c0_i32_1 = arith.constant 0 : i32
    return %c0_i32, %c0_i32_0 : i32, i32
  }
  func.func @transform_1(%arg0: i32) -> (i32, i32) {
    %c0_i32 = arith.constant 0 : i32
    %c0_i32_0 = arith.constant 0 : i32
    return %arg0, %c0_i32 : i32, i32
  }
  func.func @transform_2(%arg0: i32) -> (i32, i32) {
    %c0_i32 = arith.constant 0 : i32
    %c0_i32_0 = arith.constant 0 : i32
    %c0_i32_1 = arith.constant 0 : i32
    return %c0_i32, %c0_i32_0 : i32, i32
  }
  func.func @transform_3(%arg0: i32) -> i32 {
    %c0_i32 = arith.constant 0 : i32
    %c0_i32_0 = arith.constant 0 : i32
    return %c0_i32 : i32
  }
  func.func @transform_4(%arg0: i32) -> (i32, i32) {
    %c0_i32 = arith.constant 0 : i32
    %c0_i32_0 = arith.constant 0 : i32
    %c0_i32_1 = arith.constant 0 : i32
    return %c0_i32, %c0_i32_0 : i32, i32
  }
}

</mosaic_0001>

<llo_original>
// kernel: tpu_custom_call.1
$region0: #{tpu_custom_call.1}
  #allocation0 [shape = 'u32[]', space=smem, size = 0x4, offset = 0x4, fixed_abs, tag = 'smem constant byte address 0x4 - core index']
  #allocation1 [shape = 'u32[144,128]{1,0:T(1,128)}', space=vmem, size = 0x12000, scoped, tag = 'internal scratch']
  #allocation2 [shape = 'bf16[16,32]{1,0:T(16,128)(2,1)}', space=vmem, size = 0x1000, scoped, tag = 'scratch operand']
  #allocation3 [shape = 'f32[16,1]{1,0:T(8,128)}', space=vmem, size = 0x2000, scoped, tag = 'scratch operand']
  #allocation4 [shape = 'f32[16,1]{1,0:T(8,128)}', space=vmem, size = 0x2000, scoped, tag = 'scratch operand']
  #allocation5 [shape = 'f32[16,1]{1,0:T(8,128)}', space=vmem, size = 0x2000, scoped, tag = 'scratch operand']
  %s0 = inlined_call_operand.vmem [shape: f32[16,32], index: 0, kind: input, shape index: {}]
  %s1 = inlined_call_operand.hbm [shape: f32[16,32], index: 1, kind: input, shape index: {}]
  %s2 = inlined_call_operand.vmem [shape: s32[16,1], index: 2, kind: input, shape index: {}]
  %s3 = inlined_call_operand.vmem [shape: f32[2], index: 3, kind: input, shape index: {}]
  %s4 = inlined_call_operand.hbm [shape: f32[1,2], index: 4, kind: output, shape index: {}]
  %s5 = sld [smem:[#allocation0]]
  $region42: #{tpu_custom_call.1} parent=0
    _
  %s7 = ssub.s32 1, %s5
  %s8 = scalar_select 0, %s7, %s5
  $region1: #{tpu_custom_call.1} parent=0
    #allocation6 [shape = 'u8[8192]{0}', space=vmem, size = 0x2000, scoped, tag = 'input window, operand 1, single buffered']
    #allocation7 [shape = 's32[1]{0}', space=sflag, size = 0x4, scoped, tag = 'scoped memory for tpu_custom_call.1']
    #allocation8 [shape = 's32[1]{0}', space=sflag, size = 0x4, scoped, tag = 'scoped memory for tpu_custom_call.1']
    #allocation9 [shape = 's32[1]{0}', space=sflag, size = 0x4, scoped, tag = 'scoped memory for tpu_custom_call.1']
    #allocation10 [shape = 'u8[512]{0}', space=smem, size = 0x200, scoped, tag = 'input window, operand 3, single buffered']
    #allocation11 [shape = 'u8[512]{0}', space=vmem, size = 0x400, scoped, tag = 'output window, operand 0, single buffered']
    %9 = vsyncpa [#allocation7], 0
    %10 = vsyncpa [#allocation9], 0
    %11 = vsyncpa [#allocation8], 0
    // Predicated region
    $region2: #{tpu_custom_call.1} parent=1 // pred_check
      _
    $region3: #{tpu_custom_call.1} parent=1 // pred_check_branch
      %13 = sbr.rel (0) target = $region5
    $region4: #{tpu_custom_call.1} parent=1 // pred_region
      _
    $region5: #{tpu_custom_call.1} parent=1 // pred_fallthru
      _
    // Predicated region
    $region6: #{tpu_custom_call.1} parent=1 // pred_check
      _
    $region7: #{tpu_custom_call.1} parent=1 // pred_check_branch
      %15 = sbr.rel (0) target = $region9
    $region8: #{tpu_custom_call.1} parent=1 // pred_region
      %s17 = ssub.s32 256, 256
      %18 = vsyncadd [#allocation7], %s17
      %s19 = sshll.u32 [#allocation6], 4
      %s20 = int_to_ptr.vmem [resolvable:$true] %s19
      %25 = dma.hbm_to_vmem [thread:$0]  %s1, 256, %s20, [#allocation7], 128, 128, 8
    $region9: #{tpu_custom_call.1} parent=1 // pred_fallthru
      _
    // Predicated region
    $region10: #{tpu_custom_call.1} parent=1 // pred_check
      _
    $region11: #{tpu_custom_call.1} parent=1 // pred_check_branch
      %27 = sbr.rel (0) target = $region13
    $region12: #{tpu_custom_call.1} parent=1 // pred_region
      _
    $region13: #{tpu_custom_call.1} parent=1 // pred_fallthru
      _
    // Predicated region
    $region14: #{tpu_custom_call.1} parent=1 // pred_check
      _
    $region15: #{tpu_custom_call.1} parent=1 // pred_check_branch
      %29 = sbr.rel (0) target = $region17
    $region16: #{tpu_custom_call.1} parent=1 // pred_region
      %s31 = ssub.s32 16, 16
      %32 = vsyncadd [#allocation9], %s31
      %s34 = sshll.u32 %s3, 4
      %s35 = int_to_ptr.vmem [resolvable:$true] %s34
      %37 = dma.vmem_to_smem %s35, 16, [#allocation10], [#allocation9]
    $region17: #{tpu_custom_call.1} parent=1 // pred_fallthru
      _
    // Predicated region
    $region18: #{tpu_custom_call.1} parent=1 // pred_check
      _
    $region19: #{tpu_custom_call.1} parent=1 // pred_check_branch
      %39 = sbr.rel (0) target = $region21
    $region20: #{tpu_custom_call.1} parent=1 // pred_region
      %40 = dma.done [#allocation7], 256
    $region21: #{tpu_custom_call.1} parent=1 // pred_fallthru
      _
    // Predicated region
    $region22: #{tpu_custom_call.1} parent=1 // pred_check
      _
    $region23: #{tpu_custom_call.1} parent=1 // pred_check_branch
      %42 = sbr.rel (0) target = $region25
    $region24: #{tpu_custom_call.1} parent=1 // pred_region
      %43 = dma.done [#allocation9], 16
    $region25: #{tpu_custom_call.1} parent=1 // pred_fallthru
      _
    %44 = sfence
    %p46 = scmp.eq.s32.totalorder 0, 0
    // Predicated region
    $region26: #{tpu_custom_call.1} parent=1 // pred_check
      %p47 = pneg %p46
    $region27: #{tpu_custom_call.1} parent=1 // pred_check_branch
      %49 = sbr.rel (%p47) target = $region29
    $region28: #{tpu_custom_call.1} parent=1 // pred_region
      %v50 = vld [vmem:[%s0] sm:$0xff]
      %v51 = vld [vmem:[%s0 + $0x8] sm:$0xff]
      %v52 = vmul.f32 %v50, %v50
      %v53 = vmul.f32 %v51, %v51
      %vm54 = vcmask 261120
      %v55 = vsel %vm54, %v52, 0.0
      %56 = vadd.xlane.f32.xlu0 %v55
      %v57 = vpop.xlane.xlu0 %56
      %v58 = vsel %vm54, %v53, 0.0
      %59 = vadd.xlane.f32.xlu0 %v58
      %v60 = vpop.xlane.xlu0 %59
      %v61 = vmax.f32 %v57, 1e-24
      %v62 = vmax.f32 %v60, 1e-24
      %v63 = vrsqrt.pop %v61
      %v64 = vrsqrt.pop %v62
      %v65 = vmul.f32 %v50, %v63
      %v66 = vmul.f32 %v51, %v64
      %v67 = vpack.c.bf16 %v66, %v65
      %68 = vst.msk [vmem:[#allocation2] sm:$0xff] %vm54, %v67
      %vm69 = vcmask 7168
      %70 = vst.msk [vmem:[#allocation3] sm:$0xff] %vm69, -1e+30
      %71 = vst.msk [vmem:[#allocation3 + $0x8] sm:$0xff] %vm69, -1e+30
      %72 = vst.msk [vmem:[#allocation4] sm:$0xff] %vm69, 0.0
      %73 = vst.msk [vmem:[#allocation4 + $0x8] sm:$0xff] %vm69, 0.0
      %74 = vst.msk [vmem:[#allocation5] sm:$0xff] %vm69, 0.0
      %75 = vst.msk [vmem:[#allocation5 + $0x8] sm:$0xff] %vm69, 0.0
    $region29: #{tpu_custom_call.1} parent=1 // pred_fallthru
      _
    %v76 = vld [vmem:[#allocation6] sm:$0xff]
    %v77 = vld [vmem:[#allocation6 + $0x8] sm:$0xff]
    %v78 = vmul.f32 %v76, %v76
    %v79 = vmul.f32 %v77, %v77
    %vm80 = vcmask 261120
    %v81 = vsel %vm80, %v78, 0.0
    %82 = vadd.xlane.f32.xlu0 %v81
    %v83 = vpop.xlane.xlu0 %82
    %v84 = vsel %vm80, %v79, 0.0
    %85 = vadd.xlane.f32.xlu0 %v84
    %v86 = vpop.xlane.xlu0 %85
    %v87 = vmax.f32 %v83, 1e-24
    %v88 = vmax.f32 %v86, 1e-24
    %v89 = vrsqrt.pop %v87
    %v90 = vrsqrt.pop %v88
    %v91 = vmul.f32 %v76, %v89
    %v92 = vmul.f32 %v77, %v90
    %v93 = vpack.c.bf16 %v92, %v91
    %v94 = vld [vmem:[#allocation2] sm:$0xff]
    %v96 = vsel %vm80, %v94, 0
    %v99 = vsel %vm80, %v93, 0
    %101 = vmatprep.subr.bf16.mxu0 0
    %102 = vmatpush1.bf16.xpose.msra.mxu0 %v99
    %103 = vmatprep.subr.bf16.mxu0 0
    %104 = vmatpush1.bf16.xpose.msra.mxu0 0
    %105 = vmatprep.subr.bf16.mxu0 0
    %106 = vmatpush1.bf16.xpose.msra.mxu0 0
    %107 = vmatprep.subr.bf16.mxu0 0
    %108 = vmatpush1.bf16.xpose.msra.mxu0 0
    %109 = vmatprep.subr.bf16.mxu0 0
    %110 = vmatpush1.bf16.xpose.msra.mxu0 0
    %111 = vmatprep.subr.bf16.mxu0 0
    %112 = vmatpush1.bf16.xpose.msra.mxu0 0
    %113 = vmatprep.subr.bf16.mxu0 0
    %114 = vmatpush1.bf16.xpose.msra.mxu0 0
    %115 = vmatprep.subr.bf16.mxu0 0
    %116 = vmatpush1.bf16.xpose.msra.mxu0 0
    %117 = vmatprep.subr.bf16.mxu0 0
    %118 = vmatpush1.bf16.xpose.msra.mxu0 0
    %119 = vmatprep.subr.bf16.mxu0 0
    %120 = vmatpush1.bf16.xpose.msra.mxu0 0
    %121 = vmatprep.subr.bf16.mxu0 0
    %122 = vmatpush1.bf16.xpose.msra.mxu0 0
    %123 = vmatprep.subr.bf16.mxu0 0
    %124 = vmatpush1.bf16.xpose.msra.mxu0 0
    %125 = vmatprep.subr.bf16.mxu0 0
    %126 = vmatpush1.bf16.xpose.msra.mxu0 0
    %127 = vmatprep.subr.bf16.mxu0 0
    %128 = vmatpush1.bf16.xpose.msra.mxu0 0
    %129 = vmatprep.subr.bf16.mxu0 0
    %130 = vmatpush1.bf16.xpose.msra.mxu0 0
    %131 = vmatprep.subr.bf16.mxu0 0
    %132 = vmatpush1.bf16.xpose.msra.mxu0 0
    %133 = vmatprep.mubr.bf16.mxu0 0
    %134 = vmatmul.mubr.bf16.gmra.mrb[0].mxu0 %v96
    %v135 = vpop.f32.mrb[0].mxu0
    %v136 = vadd.f32 0.0, %v135
    %v137 = vpop.f32.mrb[0].mxu0
    %v138 = vpop.f32.mrb[0].mxu0
    %v139 = vadd.f32 0.0, %v138
    %v140 = vpop.f32.mrb[0].mxu0
    %141 = vdwg.mxu0
    %v142 = vld [vmem:[%s2] sm:$0xff]
    %v143 = vld [vmem:[%s2 + $0x8] sm:$0xff]
    %v144 = vlaneseq
    %v145 = vand.u32 %v144, 127
    %s146 = smul.u32 0, 16
    %v147 = vstv %s146
    %v148 = vadd.s32 %v145, %v147
    %149 = vset.pattern.permute.xlu0 0
    %150 = vperm.xlu0 %149, %v142
    %v151 = vpop.permute.xlu0 %150
    %152 = vset.pattern.permute.xlu0 0
    %153 = vperm.xlu0 %152, %v143
    %v154 = vpop.permute.xlu0 %153
    %vm155 = vcmp.eq.s32.totalorder %v148, %v151
    %vm156 = vcmp.eq.s32.totalorder %v148, %v154
    %v157 = vsel %vm155, %v136, 0.0
    %v158 = vsel %vm156, %v139, 0.0
    %vm159 = vcmask 130048
    %v160 = vsel %vm159, %v157, 0.0
    %161 = vadd.xlane.f32.xlu0 %v160
    %v162 = vpop.xlane.xlu0 %161
    %v163 = vsel %vm159, %v158, 0.0
    %164 = vadd.xlane.f32.xlu0 %v163
    %v165 = vpop.xlane.xlu0 %164
    %v166 = vmul.f32 %v162, %v162
    %v167 = vmul.f32 %v165, %v165
    %v168 = vsub.f32 1.0, %v166
    %v169 = vsub.f32 1.0, %v167
    %v170 = vmax.f32 %v168, 0.0
    %v171 = vmax.f32 %v169, 0.0
    %v172 = vmin.f32 %v170, 1.0
    %v173 = vmin.f32 %v171, 1.0
    %v174 = vrsqrt.pop %v172
    %v175 = vmul.f32 %v172, %v174
    %vm176 = vcmp.eq.f32.partialorder %v172, inf
    %v177 = vsel %vm176, %v172, %v175
    %vm178 = vcmp.eq.f32.partialorder %v172, 0.0
    %v179 = vand.u32 %v172, 2147483648
    %v180 = vsel %vm178, %v179, %v177
    %v181 = vrsqrt.pop %v173
    %v182 = vmul.f32 %v173, %v181
    %vm183 = vcmp.eq.f32.partialorder %v173, inf
    %v184 = vsel %vm183, %v173, %v182
    %vm185 = vcmp.eq.f32.partialorder %v173, 0.0
    %v186 = vand.u32 %v173, 2147483648
    %v187 = vsel %vm185, %v186, %v184
    %v188 = vmul.f32 %v162, 0.9553365
    %v189 = vmul.f32 %v165, 0.9553365
    %v190 = vmul.f32 %v180, 0.29552022
    %v191 = vmul.f32 %v187, 0.29552022
    %v192 = vsub.f32 %v188, %v190
    %v193 = vsub.f32 %v189, %v191
    %v194 = vsub.f32 %v162, -0.9553365
    %v195 = vsub.f32 %v165, -0.9553365
    %vm196 = vcmp.gt.f32.partialorder %v194, 0.0
    %vm197 = vcmp.gt.f32.partialorder %v195, 0.0
    %v198 = vsub.f32 %v162, 0.08865606
    %v199 = vsub.f32 %v165, 0.08865606
    %v200 = vsel %vm196, %v192, %v198
    %v201 = vsel %vm197, %v193, %v199
    %v202 = vsel %vm155, %v200, %v136
    %v203 = vsel %vm156, %v201, %v139
    %v204 = vmul.f32 %v202, 15.0
    %v205 = vmul.f32 %v203, 15.0
    %v206 = vld [vmem:[#allocation3] sm:$0xff]
    %v207 = vld [vmem:[#allocation3 + $0x8] sm:$0xff]
    %v208 = vsel %vm159, %v204, -inf
    %209 = vmax.xlane.f32.xlu0 %v208
    %v210 = vpop.xlane.xlu0 %209
    %v211 = vsel %vm159, %v205, -inf
    %212 = vmax.xlane.f32.xlu0 %v211
    %v213 = vpop.xlane.xlu0 %212
    %v214 = vmax.f32 %v206, %v210
    %v215 = vmax.f32 %v207, %v213
    %v216 = vld [vmem:[#allocation4] sm:$0xff]
    %v217 = vld [vmem:[#allocation4 + $0x8] sm:$0xff]
    %v218 = vsub.f32 %v206, %v214
    %v219 = vsub.f32 %v207, %v215
    %v220 = vmul.f32 %v218, 1.442695
    %v221 = vpow.pop %v220
    %v222 = vmul.f32 %v219, 1.442695
    %v223 = vpow.pop %v222
    %v224 = vmul.f32 %v216, %v221
    %v225 = vmul.f32 %v217, %v223
    %227 = vset.pattern.permute.xlu0 0
    %228 = vperm.xlu0 %227, %v214
    %v229 = vpop.permute.xlu0 %228
    %232 = vset.pattern.permute.xlu0 0
    %233 = vperm.xlu0 %232, %v215
    %v234 = vpop.permute.xlu0 %233
    %v236 = vsub.f32 %v204, %v229
    %v237 = vsub.f32 %v205, %v234
    %v238 = vmul.f32 %v236, 1.442695
    %v239 = vpow.pop %v238
    %v240 = vmul.f32 %v237, 1.442695
    %v241 = vpow.pop %v240
    %v242 = vsel %vm159, %v239, 0.0
    %243 = vadd.xlane.f32.xlu0 %v242
    %v244 = vpop.xlane.xlu0 %243
    %v245 = vsel %vm159, %v241, 0.0
    %246 = vadd.xlane.f32.xlu0 %v245
    %v247 = vpop.xlane.xlu0 %246
    %v248 = vadd.f32 %v224, %v244
    %v249 = vadd.f32 %v225, %v247
    %vm250 = vcmask 7168
    %251 = vst.msk [vmem:[#allocation4] sm:$0xff] %vm250, %v248
    %252 = vst.msk [vmem:[#allocation4 + $0x8] sm:$0xff] %vm250, %v249
    %vm253 = vcmp.ge.s32.totalorder %v142, %v147
    %vm254 = vcmp.ge.s32.totalorder %v143, %v147
    %s255 = sadd.s32 0, 1
    %s256 = smul.u32 %s255, 16
    %v257 = vstv %s256
    %vm258 = vcmp.lt.s32.totalorder %v142, %v257
    %vm259 = vcmp.lt.s32.totalorder %v143, %v257
    %vm260 = vmand %vm253, %vm258
    %vm261 = vmand %vm254, %vm259
    %v262 = vld [vmem:[#allocation5] sm:$0xff]
    %v263 = vld [vmem:[#allocation5 + $0x8] sm:$0xff]
    %v264 = vmul.f32 %v200, 15.0
    %v265 = vmul.f32 %v201, 15.0
    %v266 = vsel %vm260, %v264, 0.0
    %v267 = vsel %vm261, %v265, 0.0
    %v268 = vadd.f32 %v262, %v266
    %v269 = vadd.f32 %v263, %v267
    %270 = vst.msk [vmem:[#allocation5] sm:$0xff] %vm250, %v268
    %271 = vst.msk [vmem:[#allocation5 + $0x8] sm:$0xff] %vm250, %v269
    %272 = vst.msk [vmem:[#allocation3] sm:$0xff] %vm250, %v214
    %273 = vst.msk [vmem:[#allocation3 + $0x8] sm:$0xff] %vm250, %v215
    // Predicated region
    $region30: #{tpu_custom_call.1} parent=1 // pred_check
      %p274 = pneg %p46
    $region31: #{tpu_custom_call.1} parent=1 // pred_check_branch
      %276 = sbr.rel (%p274) target = $region33
    $region32: #{tpu_custom_call.1} parent=1 // pred_region
      %v277 = vld [vmem:[#allocation3] sm:$0xff]
      %v278 = vld [vmem:[#allocation3 + $0x8] sm:$0xff]
      %v279 = vld [vmem:[#allocation4] sm:$0xff]
      %v280 = vld [vmem:[#allocation4 + $0x8] sm:$0xff]
      %v281 = vlog2.pop %v279
      %v282 = vmul.f32 %v281, 0.6931472
      %v283 = vlog2.pop %v280
      %v284 = vmul.f32 %v283, 0.6931472
      %v285 = vadd.f32 %v277, %v282
      %v286 = vadd.f32 %v278, %v284
      %v287 = vld [vmem:[#allocation5] sm:$0xff]
      %v288 = vld [vmem:[#allocation5 + $0x8] sm:$0xff]
      %v289 = vsub.f32 %v285, %v287
      %v290 = vsub.f32 %v286, %v288
      %v291 = vsel %vm250, %v289, 0.0
      %v292 = vsel %vm250, %v290, 0.0
      %v293 = vadd.f32 %v291, %v292
      %v294 = vrot.slane %v293, 4
      %v295 = vadd.f32 %v293, %v294
      %v296 = vrot.slane %v295, 2
      %v297 = vadd.f32 %v295, %v296
      %v298 = vrot.slane %v297, 1
      %v299 = vadd.f32 %v297, %v298
      %v300 = vrcp.pop 16.0
      %v301 = vmul.f32 %v299, %v300
      %vm302 = vcmp.ge.f32.partialorder %v287, %v277
      %vm303 = vcmp.ge.f32.partialorder %v288, %v278
      %v304 = vsel %vm302, 1, 0
      %v305 = vsel %vm303, 1, 0
      %v306 = vcvt.s32.f32 %v304
      %v307 = vcvt.s32.f32 %v305
      %v308 = vsel %vm250, %v306, 0.0
      %v309 = vsel %vm250, %v307, 0.0
      %v310 = vadd.f32 %v308, %v309
      %v311 = vrot.slane %v310, 4
      %v312 = vadd.f32 %v310, %v311
      %v313 = vrot.slane %v312, 2
      %v314 = vadd.f32 %v312, %v313
      %v315 = vrot.slane %v314, 1
      %v316 = vadd.f32 %v314, %v315
      %v317 = vmul.f32 %v316, 6.25
      %v318 = vld [vmem:[#allocation2] sm:$0xf]
      %v319 = vld [vmem:[#allocation2] sm:$0xf0]
      %v321 = vrot.slane %v319, 4
      %v323 = vsel %vm80, %v318, 0
      %v326 = vsel %vm80, %v321, 0
      %328 = vmatprep.subr.bf16.mxu0 0
      %329 = vmatpush1.bf16.xpose.msra.mxu0 %v326
      %330 = vmatprep.subr.bf16.mxu0 0
      %331 = vmatpush1.bf16.xpose.msra.mxu0 0
      %332 = vmatprep.subr.bf16.mxu0 0
      %333 = vmatpush1.bf16.xpose.msra.mxu0 0
      %334 = vmatprep.subr.bf16.mxu0 0
      %335 = vmatpush1.bf16.xpose.msra.mxu0 0
      %336 = vmatprep.subr.bf16.mxu0 0
      %337 = vmatpush1.bf16.xpose.msra.mxu0 0
      %338 = vmatprep.subr.bf16.mxu0 0
      %339 = vmatpush1.bf16.xpose.msra.mxu0 0
      %340 = vmatprep.subr.bf16.mxu0 0
      %341 = vmatpush1.bf16.xpose.msra.mxu0 0
      %342 = vmatprep.subr.bf16.mxu0 0
      %343 = vmatpush1.bf16.xpose.msra.mxu0 0
      %344 = vmatprep.subr.bf16.mxu0 0
      %345 = vmatpush1.bf16.xpose.msra.mxu0 0
      %346 = vmatprep.subr.bf16.mxu0 0
      %347 = vmatpush1.bf16.xpose.msra.mxu0 0
      %348 = vmatprep.subr.bf16.mxu0 0
      %349 = vmatpush1.bf16.xpose.msra.mxu0 0
      %350 = vmatprep.subr.bf16.mxu0 0
      %351 = vmatpush1.bf16.xpose.msra.mxu0 0
      %352 = vmatprep.subr.bf16.mxu0 0
      %353 = vmatpush1.bf16.xpose.msra.mxu0 0
      %354 = vmatprep.subr.bf16.mxu0 0
      %355 = vmatpush1.bf16.xpose.msra.mxu0 0
      %356 = vmatprep.subr.bf16.mxu0 0
      %357 = vmatpush1.bf16.xpose.msra.mxu0 0
      %358 = vmatprep.subr.bf16.mxu0 0
      %359 = vmatpush1.bf16.xpose.msra.mxu0 0
      %360 = vmatprep.mubr.bf16.mxu0 0
      %361 = vmatmul.mubr.bf16.gmra.mrb[0].mxu0 %v323
      %v362 = vpop.f32.mrb[0].mxu0
      %v363 = vadd.f32 0.0, %v362
      %v364 = vpop.f32.mrb[0].mxu0
      %v365 = vpop.f32.mrb[0].mxu0
      %v366 = vpop.f32.mrb[0].mxu0
      %367 = vdwg.mxu0
      %s368 = sld [smem:[#allocation10]]
      %v369 = vstv %s368
      %v370 = vmul.f32 %v363, %v369
      %s371 = sld [smem:[#allocation10 + $0x1]]
      %v372 = vstv %s371
      %v373 = vadd.f32 %v370, %v372
      %vm374 = vcmask 64512
      %v375 = vsel %vm374, %v373, -inf
      %376 = vmax.xlane.f32.xlu0 %v375
      %v377 = vpop.xlane.xlu0 %376
      %v378 = vsub.f32 %v373, %v377
      %v379 = vmul.f32 %v378, 1.442695
      %v380 = vpow.pop %v379
      %v381 = vsel %vm374, %v380, 0.0
      %382 = vadd.xlane.f32.xlu0 %v381
      %v383 = vpop.xlane.xlu0 %382
      %v384 = vlog2.pop %v383
      %v385 = vmul.f32 %v384, 0.6931472
      %v386 = vadd.f32 %v377, %v385
      %v387 = vlaneseq
      %v388 = vshrl.u32 %v387, 7
      %vm389 = vcmp.eq.s32.totalorder %v388, %v145
      %v390 = vsel %vm389, %v373, 0.0
      %v391 = vsel %vm374, %v390, 0.0
      %392 = vadd.xlane.f32.xlu0 %v391
      %v393 = vpop.xlane.xlu0 %392
      %v394 = vsub.f32 %v386, %v393
      %v395 = vrot.slane %v394, 4
      %v396 = vadd.f32 %v394, %v395
      %v397 = vrot.slane %v396, 2
      %v398 = vadd.f32 %v396, %v397
      %v399 = vrot.slane %v398, 1
      %v400 = vadd.f32 %v398, %v399
      %v401 = vrcp.pop 8.0
      %v402 = vmul.f32 %v400, %v401
      %vm403 = vcmp.eq.s32.totalorder %v145, 0
      %v404 = vadd.f32 %v301, %v402
      %406 = vset.pattern.permute.xlu0 0
      %407 = vperm.xlu0 %406, %v404
      %v408 = vpop.permute.xlu0 %407
      %411 = vset.pattern.permute.xlu0 0
      %412 = vperm.xlu0 %411, %v317
      %v413 = vpop.permute.xlu0 %412
      %v415 = vsel %vm403, %v408, %v413
      %vm416 = vcmask 8192
      %417 = vst.msk [vmem:[#allocation11] sm:$0x1] %vm416, %v415
    $region33: #{tpu_custom_call.1} parent=1 // pred_fallthru
      _
    // Predicated region
    $region34: #{tpu_custom_call.1} parent=1 // pred_check
      _
    $region35: #{tpu_custom_call.1} parent=1 // pred_check_branch
      %419 = sbr.rel (0) target = $region37
    $region36: #{tpu_custom_call.1} parent=1 // pred_region
      %s421 = ssub.s32 16, 16
      %422 = vsyncadd [#allocation8], %s421
      %s424 = sshll.u32 [#allocation11], 4
      %s425 = int_to_ptr.vmem [resolvable:$true] %s424
      %427 = dma.vmem_to_hbm [thread:$0]  %s425, 16, %s4, [#allocation8]
    $region37: #{tpu_custom_call.1} parent=1 // pred_fallthru
      _
    // Predicated region
    $region38: #{tpu_custom_call.1} parent=1 // pred_check
      _
    $region39: #{tpu_custom_call.1} parent=1 // pred_check_branch
      %429 = sbr.rel (0) target = $region41
    $region40: #{tpu_custom_call.1} parent=1 // pred_region
      %430 = dma.done [#allocation8], 16
    $region41: #{tpu_custom_call.1} parent=1 // pred_fallthru
      _
    %431 = vsyncpa [#allocation7], 1
    %432 = vsyncpa [#allocation8], 1
    %433 = vsyncpa [#allocation9], 1

</llo_original>
